<compile_context>
chip_gen: v6e
topology: v6e:2x2x1
jax: 0.10.0
libtpu: 0.0.40
codegen_flags: <defaults>
</compile_context>

<pallas_src>
import math
from functools import partial

import jax
import jax.numpy as jnp
from jax.experimental import pallas as pl
from jax.experimental.pallas import tpu as pltpu


def _sdpa_kernel(q_ref, k_ref, v_ref, mask_ref, ctx_ref, attn_ref, *, scale):
    # q_ref: (BH_BLK, Lq, dk), k_ref: (BH_BLK, Lk, dk), v_ref: (BH_BLK, Lk, dv)
    # mask_ref: (BH_BLK, Lq, Lk) int32 (nonzero == masked out)
    q = q_ref[...]
    k = k_ref[...]
    v = v_ref[...]

    # scores = Q @ K^T / sqrt(d_k); batched contraction on the MXU, f32 accumulation.
    scores = jnp.einsum("bqd,bkd->bqk", q, k,
                        preferred_element_type=jnp.float32) * scale

    # masked_fill_(attn_mask, -1e9)
    scores = jnp.where(mask_ref[...] != 0, jnp.float32(-1e9), scores)

    # Numerically-stable softmax along the last (lane) axis.
    m = jnp.max(scores, axis=-1, keepdims=True)
    e = jnp.exp(scores - m)
    denom = jnp.sum(e, axis=-1, keepdims=True)
    attn = e * pl.reciprocal(denom, approx=True)   # EUP reciprocal (free slot)

    # context = attn @ V; batched, f32 accumulation.
    ctx = jnp.einsum("bqk,bkd->bqd", attn.astype(v.dtype), v,
                     preferred_element_type=jnp.float32)

    ctx_ref[...] = ctx.astype(ctx_ref.dtype)
    attn_ref[...] = attn.astype(attn_ref.dtype)


def _choose_bh_block(bh, lq, lk, dk, dv, itemsize, budget_bytes=4 << 20):
    """Largest divisor of `bh` whose double-buffered per-step tiles fit `budget_bytes`,
    capped so the grid has >= 2 steps (lets v7x shard the parallel axis on both TCs)."""
    per_bh = (lq * dk + lk * dk + lk * dv + lq * dv) * itemsize   # q, k, v, ctx tiles
    per_bh += lq * lk * (4 + itemsize)                            # mask (i32) + attn out
    per_bh *= 2                                                   # double buffering
    blk = max(1, min(bh, budget_bytes // max(per_bh, 1)))
    if bh >= 2:
        blk = min(blk, bh // 2)
    blk = max(1, blk)
    while bh % blk != 0:
        blk -= 1
    return blk


def scaled_dot_product_attention(Q, K, V, attn_mask, d_k=None):
    """Q:(B,H,Lq,dk) K:(B,H,Lk,dk) V:(B,H,Lk,dv) attn_mask:(B,H,Lq,Lk) bool/int.
    Returns (context:(B,H,Lq,dv), attn:(B,H,Lq,Lk))."""
    B, Hn, Lq, dk = Q.shape
    Lk = K.shape[2]
    dv = V.shape[3]
    if d_k is None:
        d_k = dk
    scale = 1.0 / math.sqrt(d_k)

    BH = B * Hn
    q = Q.reshape(BH, Lq, dk)
    k = K.reshape(BH, Lk, dk)
    v = V.reshape(BH, Lk, dv)
    mask = attn_mask.reshape(BH, Lq, Lk).astype(jnp.int32)

    blk = _choose_bh_block(BH, Lq, Lk, dk, dv, Q.dtype.itemsize)
    grid = (BH // blk,)

    ctx, attn = pl.pallas_call(
        partial(_sdpa_kernel, scale=scale),
        out_shape=(
            jax.ShapeDtypeStruct((BH, Lq, dv), Q.dtype),
            jax.ShapeDtypeStruct((BH, Lq, Lk), Q.dtype),
        ),
        grid_spec=pltpu.PrefetchScalarGridSpec(
            num_scalar_prefetch=0,
            grid=grid,
            in_specs=[
                pl.BlockSpec((blk, Lq, dk), lambda i: (i, 0, 0)),
                pl.BlockSpec((blk, Lk, dk), lambda i: (i, 0, 0)),
                pl.BlockSpec((blk, Lk, dv), lambda i: (i, 0, 0)),
                pl.BlockSpec((blk, Lq, Lk), lambda i: (i, 0, 0)),
            ],
            out_specs=[
                pl.BlockSpec((blk, Lq, dv), lambda i: (i, 0, 0)),
                pl.BlockSpec((blk, Lq, Lk), lambda i: (i, 0, 0)),
            ],
        ),
        compiler_params=pltpu.CompilerParams(
            dimension_semantics=("parallel",),
            vmem_limit_bytes=32 * 1024 * 1024,
        ),
    )(q, k, v, mask)

    return ctx.reshape(B, Hn, Lq, dv), attn.reshape(B, Hn, Lq, Lk)


def scaled_dot_product_attention_ref(Q, K, V, attn_mask, d_k=None):
    """Pure-JAX reference mirroring the PyTorch module."""
    if d_k is None:
        d_k = Q.shape[-1]
    scores = jnp.einsum("bhqd,bhkd->bhqk", Q, K) / math.sqrt(d_k)
    scores = jnp.where(attn_mask, -1e9, scores)
    attn = jax.nn.softmax(scores, axis=-1)
    ctx = jnp.einsum("bhqk,bhkd->bhqd", attn, V)
    return ctx, attn


if __name__ == "__main__":
    key = jax.random.PRNGKey(0)
    kq, kk, kv = jax.random.split(key, 3)

    B, Hn, Lq, Lk, dk, dv = 2, 2, 8, 8, 64, 64
    Q = jax.random.normal(kq, (B, Hn, Lq, dk), dtype=jnp.float32)
    K = jax.random.normal(kk, (B, Hn, Lk, dk), dtype=jnp.float32)
    V = jax.random.normal(kv, (B, Hn, Lk, dv), dtype=jnp.float32)
    # causal mask (True == masked out), broadcast to (B, H, Lq, Lk)
    causal = jnp.triu(jnp.ones((Lq, Lk), dtype=bool), k=1)
    attn_mask = jnp.broadcast_to(causal, (B, Hn, Lq, Lk))

    ctx, attn = scaled_dot_product_attention(Q, K, V, attn_mask, d_k=dk)
    ctx, attn = jax.block_until_ready((ctx, attn))

    ctx_ref, attn_ref = scaled_dot_product_attention_ref(Q, K, V, attn_mask, d_k=dk)
    assert ctx.shape == (B, Hn, Lq, dv) and attn.shape == (B, Hn, Lq, Lk)
    # tolerance covers the approximate EUP reciprocal used for the softmax denom
    assert jnp.allclose(attn, attn_ref, atol=2e-2, rtol=2e-2), "attn mismatch"
    assert jnp.allclose(ctx, ctx_ref, atol=2e-2, rtol=2e-2), "context mismatch"

    print("KERNEL_OK")
</pallas_src>

<mosaic_0001>
module attributes {stable_mosaic.version = 11 : i64} {
  func.func @_sdpa_kernel(%arg0: i32, %arg1: memref<2x8x64xf32, #tpu.memory_space<vmem>>, %arg2: memref<2x8x64xf32, #tpu.memory_space<vmem>>, %arg3: memref<2x8x64xf32, #tpu.memory_space<vmem>>, %arg4: memref<2x8x8xi32, #tpu.memory_space<vmem>>, %arg5: memref<2x8x64xf32, #tpu.memory_space<vmem>>, %arg6: memref<2x8x8xf32, #tpu.memory_space<vmem>>) attributes {dimension_semantics = [#tpu.dimension_semantics<parallel>], iteration_bounds = array<i64: 2>, scalar_prefetch = 0 : i64, scratch_operands = 0 : i64, tpu.core_type = #tpu.core_type<tc>, window_params = [{transform_indices = @transform_0, window_bounds = array<i64: 2, 8, 64>}, {transform_indices = @transform_1, window_bounds = array<i64: 2, 8, 64>}, {transform_indices = @transform_2, window_bounds = array<i64: 2, 8, 64>}, {transform_indices = @transform_3, window_bounds = array<i64: 2, 8, 8>}, {transform_indices = @transform_4, window_bounds = array<i64: 2, 8, 64>}, {transform_indices = @transform_5, window_bounds = array<i64: 2, 8, 8>}]} {
    %c0 = arith.constant 0 : index
    %c0_0 = arith.constant 0 : index
    %c0_1 = arith.constant 0 : index
    %0 = vector.load %arg1[%c0, %c0_0, %c0_1] : memref<2x8x64xf32, #tpu.memory_space<vmem>>, vector<2x8x64xf32>
    %c0_2 = arith.constant 0 : index
    %c0_3 = arith.constant 0 : index
    %c0_4 = arith.constant 0 : index
    %1 = vector.load %arg2[%c0_2, %c0_3, %c0_4] : memref<2x8x64xf32, #tpu.memory_space<vmem>>, vector<2x8x64xf32>
    %c0_5 = arith.constant 0 : index
    %c0_6 = arith.constant 0 : index
    %c0_7 = arith.constant 0 : index
    %2 = vector.load %arg3[%c0_5, %c0_6, %c0_7] : memref<2x8x64xf32, #tpu.memory_space<vmem>>, vector<2x8x64xf32>
    "tpu.trace_start"() <{level = 10 : i32, message = "bqd,bkd->bqk"}> : () -> ()
    %cst = arith.constant dense<0.000000e+00> : vector<2x8x8xf32>
    %3 = tpu.matmul %0, %1, %cst {dimension_numbers = #tpu.dot_dimension_numbers<[2], [2], [1], [1], [0, 0, 0, 1, 1, 1], [0], [0]>} : vector<2x8x64xf32>, vector<2x8x64xf32>, vector<2x8x8xf32> -> vector<2x8x8xf32>
    "tpu.trace_stop"() : () -> ()
    %cst_8 = arith.constant 1.250000e-01 : f32
    %4 = vector.broadcast %cst_8 : f32 to vector<2x8x8xf32>
    %5 = arith.mulf %3, %4 : vector<2x8x8xf32>
    %c0_9 = arith.constant 0 : index
    %c0_10 = arith.constant 0 : index
    %c0_11 = arith.constant 0 : index
    %6 = vector.load %arg4[%c0_9, %c0_10, %c0_11] : memref<2x8x8xi32, #tpu.memory_space<vmem>>, vector<2x8x8xi32>
    %c0_i32 = arith.constant 0 : i32
    %7 = vector.broadcast %c0_i32 : i32 to vector<2x8x8xi32>
    %8 = arith.cmpi ne, %6, %7 : vector<2x8x8xi32>
    %cst_12 = arith.constant -1.000000e+09 : f32
    %9 = vector.broadcast %cst_12 : f32 to vector<2x8x8xf32>
    %10 = arith.select %8, %9, %5 : vector<2x8x8xi1>, vector<2x8x8xf32>
    %cst_13 = arith.constant dense<0xFF800000> : vector<2x8xf32>
    %11 = vector.multi_reduction <maximumf>, %10, %cst_13 [2] : vector<2x8x8xf32> to vector<2x8xf32>
    %12 = vector.shape_cast %11 : vector<2x8xf32> to vector<2x8x1xf32>
    %13 = vector.broadcast %12 : vector<2x8x1xf32> to vector<2x8x8xf32>
    %14 = arith.subf %10, %13 : vector<2x8x8xf32>
    %15 = math.exp %14 : vector<2x8x8xf32>
    %cst_14 = arith.constant dense<0.000000e+00> : vector<2x8xf32>
    %16 = vector.multi_reduction <add>, %15, %cst_14 [2] : vector<2x8x8xf32> to vector<2x8xf32>
    %17 = vector.shape_cast %16 : vector<2x8xf32> to vector<2x8x1xf32>
    %18 = tpu.reciprocal %17 {approx = true} : vector<2x8x1xf32> -> vector<2x8x1xf32>
    %19 = vector.broadcast %18 : vector<2x8x1xf32> to vector<2x8x8xf32>
    %20 = arith.mulf %15, %19 : vector<2x8x8xf32>
    "tpu.trace_start"() <{level = 10 : i32, message = "bqk,bkd->bqd"}> : () -> ()
    %cst_15 = arith.constant dense<0.000000e+00> : vector<2x8x64xf32>
    %21 = tpu.matmul %20, %2, %cst_15 {dimension_numbers = #tpu.dot_dimension_numbers<[2], [1], [1], [2], [0, 0, 0, 1, 1, 2], [0], [0]>} : vector<2x8x8xf32>, vector<2x8x64xf32>, vector<2x8x64xf32> -> vector<2x8x64xf32>
    "tpu.trace_stop"() : () -> ()
    %c0_16 = arith.constant 0 : index
    %c0_17 = arith.constant 0 : index
    %c0_18 = arith.constant 0 : index
    %22 = vector.load %arg5[%c0_16, %c0_17, %c0_18] : memref<2x8x64xf32, #tpu.memory_space<vmem>>, vector<2x8x64xf32>
    tpu.vector_store %arg5[%c0_16, %c0_17, %c0_18], %21 {strides = array<i32>} : memref<2x8x64xf32, #tpu.memory_space<vmem>>, vector<2x8x64xf32>,
    %c0_19 = arith.constant 0 : index
    %c0_20 = arith.constant 0 : index
    %c0_21 = arith.constant 0 : index
    %23 = vector.load %arg6[%c0_19, %c0_20, %c0_21] : memref<2x8x8xf32, #tpu.memory_space<vmem>>, vector<2x8x8xf32>
    tpu.vector_store %arg6[%c0_19, %c0_20, %c0_21], %20 {strides = array<i32>} : memref<2x8x8xf32, #tpu.memory_space<vmem>>, vector<2x8x8xf32>,
    return
  }
  func.func @transform_0(%arg0: i32) -> (i32, i32, i32) {
    %c0_i32 = arith.constant 0 : i32
    %c0_i32_0 = arith.constant 0 : i32
    %c0_i32_1 = arith.constant 0 : i32
    return %arg0, %c0_i32, %c0_i32_0 : i32, i32, i32
  }
  func.func @transform_1(%arg0: i32) -> (i32, i32, i32) {
    %c0_i32 = arith.constant 0 : i32
    %c0_i32_0 = arith.constant 0 : i32
    %c0_i32_1 = arith.constant 0 : i32
    return %arg0, %c0_i32, %c0_i32_0 : i32, i32, i32
  }
  func.func @transform_2(%arg0: i32) -> (i32, i32, i32) {
    %c0_i32 = arith.constant 0 : i32
    %c0_i32_0 = arith.constant 0 : i32
    %c0_i32_1 = arith.constant 0 : i32
    return %arg0, %c0_i32, %c0_i32_0 : i32, i32, i32
  }
  func.func @transform_3(%arg0: i32) -> (i32, i32, i32) {
    %c0_i32 = arith.constant 0 : i32
    %c0_i32_0 = arith.constant 0 : i32
    %c0_i32_1 = arith.constant 0 : i32
    return %arg0, %c0_i32, %c0_i32_0 : i32, i32, i32
  }
  func.func @transform_4(%arg0: i32) -> (i32, i32, i32) {
    %c0_i32 = arith.constant 0 : i32
    %c0_i32_0 = arith.constant 0 : i32
    %c0_i32_1 = arith.constant 0 : i32
    return %arg0, %c0_i32, %c0_i32_0 : i32, i32, i32
  }
  func.func @transform_5(%arg0: i32) -> (i32, i32, i32) {
    %c0_i32 = arith.constant 0 : i32
    %c0_i32_0 = arith.constant 0 : i32
    %c0_i32_1 = arith.constant 0 : i32
    return %arg0, %c0_i32, %c0_i32_0 : i32, i32, i32
  }
}

</mosaic_0001>

<llo_original>
// kernel: tpu_custom_call.1
$region0: #{tpu_custom_call.1}
  #allocation0 [shape = 'u32[]', space=smem, size = 0x4, offset = 0x4, fixed_abs, tag = 'smem constant byte address 0x4 - core index']
  #allocation1 [shape = 'u32[144,128]{1,0:T(1,128)}', space=vmem, size = 0x12000, scoped, tag = 'internal scratch']
  %s0 = inlined_call_operand.hbm [shape: f32[4,8,64], index: 0, kind: input, shape index: {}]
  %s1 = inlined_call_operand.hbm [shape: f32[4,8,64], index: 1, kind: input, shape index: {}]
  %s2 = inlined_call_operand.hbm [shape: f32[4,8,64], index: 2, kind: input, shape index: {}]
  %s3 = inlined_call_operand.hbm [shape: s32[4,8,8], index: 3, kind: input, shape index: {}]
  %s4 = inlined_call_operand.hbm [shape: f32[4,8,64], index: 4, kind: output, shape index: {0}]
  %s5 = inlined_call_operand.hbm [shape: f32[4,8,8], index: 5, kind: output, shape index: {1}]
  %6 = xla_tuple %s4, %s5
  %s7 = sld [smem:[#allocation0]]
  $region73: #{tpu_custom_call.1} parent=0
    _
  %s9 = ssub.s32 1, %s7
  %s10 = scalar_select 0, %s9, %s7
  $region1: #{tpu_custom_call.1} parent=0
    #allocation2 [shape = 'u8[16384]{0}', space=vmem, size = 0x4000, scoped, tag = 'input window, operand 0']
    #allocation3 [shape = 's32[2]{0}', space=sflag, size = 0x8, scoped, tag = 'scoped memory for tpu_custom_call.1']
    #allocation4 [shape = 's32[2]{0}', space=sflag, size = 0x8, scoped, tag = 'scoped memory for tpu_custom_call.1']
    #allocation5 [shape = 'u8[16384]{0}', space=vmem, size = 0x4000, scoped, tag = 'input window, operand 1']
    #allocation6 [shape = 's32[2]{0}', space=sflag, size = 0x8, scoped, tag = 'scoped memory for tpu_custom_call.1']
    #allocation7 [shape = 'u8[16384]{0}', space=vmem, size = 0x4000, scoped, tag = 'input window, operand 2']
    #allocation8 [shape = 'u8[16384]{0}', space=vmem, size = 0x4000, scoped, tag = 'input window, operand 3']
    #allocation9 [shape = 's32[2]{0}', space=sflag, size = 0x8, scoped, tag = 'scoped memory for tpu_custom_call.1']
    #allocation10 [shape = 'u8[16384]{0}', space=vmem, size = 0x4000, scoped, tag = 'output window, operand 0']
    #allocation11 [shape = 'u8[16384]{0}', space=vmem, size = 0x4000, scoped, tag = 'output window, operand 1']
    #allocation12 [shape = 's32[2]{0}', space=sflag, size = 0x8, scoped, tag = 'scoped memory for tpu_custom_call.1']
    %11 = vsyncpa [#allocation3], 0
    %s12 = scalar_lea.sflag [#allocation3], 1
    %13 = vsyncpa %s12, 0
    %14 = vsyncpa [#allocation6], 0
    %s15 = scalar_lea.sflag [#allocation6], 1
    %16 = vsyncpa %s15, 0
    %17 = vsyncpa [#allocation9], 0
    %s18 = scalar_lea.sflag [#allocation9], 1
    %19 = vsyncpa %s18, 0
    %20 = vsyncpa [#allocation4], 0
    %s21 = scalar_lea.sflag [#allocation4], 1
    %22 = vsyncpa %s21, 0
    %23 = vsyncpa [#allocation12], 0
    %s24 = scalar_lea.sflag [#allocation12], 1
    %25 = vsyncpa %s24, 0
    loop: start=0, step=1, limit=4
    $region2: #{tpu_custom_call.1} parent=1 // loop_pre_header
      _
    $region3: #{tpu_custom_call.1} parent=1 // loop_header
      %s27 = sphi 0, %s31
      %p28 = scmp.ge.s32.totalorder %s27, 4
      %s37 = sphi 0, %s39
      %s40 = sphi 0, %s37
      %s41 = sphi 0, %s40
      %s57 = sphi 0, %s41
      %s63 = sphi 0, %s65
      %s66 = sphi 0, %s63
      %s67 = sphi 0, %s66
      %s83 = sphi 0, %s67
      %s89 = sphi 0, %s91
      %s92 = sphi 0, %s89
      %s93 = sphi 0, %s92
      %s109 = sphi 0, %s93
      %s115 = sphi 0, %s117
      %s118 = sphi 0, %s115
      %s119 = sphi 0, %s118
      %s135 = sphi 0, %s119
      %s141 = sphi 0, %s143
      %s144 = sphi 0, %s141
      %s145 = sphi 0, %s144
      %s161 = sphi 0, %s145
      %s167 = sphi 0, %s169
      %s170 = sphi 0, %s167
      %s171 = sphi 0, %s170
      %s187 = sphi 0, %s171
    $region4: #{tpu_custom_call.1} parent=1 // loop_header_branch
      %30 = sbr.rel (%p28) target = $region8
    $region5: #{tpu_custom_call.1} parent=1 // loop_body
      %s32 = ssub.s32 %s27, 1
      %s33 = ssub.s32 %s27, 2
      %s34 = sadd.s32 %s27, 1
      %s35 = ssub.s32 %s27, %s34
      %p36 = scmp.eq.s32.totalorder %s35, 0
      %s38 = sadd.s32 %s37, 1
      %s39 = scalar_select %p36, %s37, %s38
      %p42 = pneg %p36
      %p43 = scmp.eq.s32.totalorder %s27, 1
      %p44 = por %p42, %p43
      %p45 = scmp.ne.s32.totalorder %s37, %s40
      %p46 = scmp.eq.s32.totalorder %s27, 0
      %p47 = por %p45, %p46
      %p48 = scmp.ne.s32.totalorder %s37, %s40
      %p49 = scmp.eq.s32.totalorder %s32, 1
      %p50 = por %p48, %p49
      %p51 = scmp.ne.s32.totalorder %s40, %s41
      %p52 = scmp.eq.s32.totalorder %s32, 0
      %p53 = por %p51, %p52
      %p54 = scmp.ne.s32.totalorder %s40, %s41
      %p55 = scmp.eq.s32.totalorder %s33, 1
      %p56 = por %p54, %p55
      %p58 = scmp.ne.s32.totalorder %s41, %s57
      %p59 = scmp.eq.s32.totalorder %s33, 0
      %p60 = por %p58, %p59
      %s61 = ssub.s32 %s27, %s34
      %p62 = scmp.eq.s32.totalorder %s61, 0
      %s64 = sadd.s32 %s63, 1
      %s65 = scalar_select %p62, %s63, %s64
      %p68 = pneg %p62
      %p69 = scmp.eq.s32.totalorder %s27, 1
      %p70 = por %p68, %p69
      %p71 = scmp.ne.s32.totalorder %s63, %s66
      %p72 = scmp.eq.s32.totalorder %s27, 0
      %p73 = por %p71, %p72
      %p74 = scmp.ne.s32.totalorder %s63, %s66
      %p75 = scmp.eq.s32.totalorder %s32, 1
      %p76 = por %p74, %p75
      %p77 = scmp.ne.s32.totalorder %s66, %s67
      %p78 = scmp.eq.s32.totalorder %s32, 0
      %p79 = por %p77, %p78
      %p80 = scmp.ne.s32.totalorder %s66, %s67
      %p81 = scmp.eq.s32.totalorder %s33, 1
      %p82 = por %p80, %p81
      %p84 = scmp.ne.s32.totalorder %s67, %s83
      %p85 = scmp.eq.s32.totalorder %s33, 0
      %p86 = por %p84, %p85
      %s87 = ssub.s32 %s27, %s34
      %p88 = scmp.eq.s32.totalorder %s87, 0
      %s90 = sadd.s32 %s89, 1
      %s91 = scalar_select %p88, %s89, %s90
      %p94 = pneg %p88
      %p95 = scmp.eq.s32.totalorder %s27, 1
      %p96 = por %p94, %p95
      %p97 = scmp.ne.s32.totalorder %s89, %s92
      %p98 = scmp.eq.s32.totalorder %s27, 0
      %p99 = por %p97, %p98
      %p100 = scmp.ne.s32.totalorder %s89, %s92
      %p101 = scmp.eq.s32.totalorder %s32, 1
      %p102 = por %p100, %p101
      %p103 = scmp.ne.s32.totalorder %s92, %s93
      %p104 = scmp.eq.s32.totalorder %s32, 0
      %p105 = por %p103, %p104
      %p106 = scmp.ne.s32.totalorder %s92, %s93
      %p107 = scmp.eq.s32.totalorder %s33, 1
      %p108 = por %p106, %p107
      %p110 = scmp.ne.s32.totalorder %s93, %s109
      %p111 = scmp.eq.s32.totalorder %s33, 0
      %p112 = por %p110, %p111
      %s113 = ssub.s32 %s27, %s34
      %p114 = scmp.eq.s32.totalorder %s113, 0
      %s116 = sadd.s32 %s115, 1
      %s117 = scalar_select %p114, %s115, %s116
      %p120 = pneg %p114
      %p121 = scmp.eq.s32.totalorder %s27, 1
      %p122 = por %p120, %p121
      %p123 = scmp.ne.s32.totalorder %s115, %s118
      %p124 = scmp.eq.s32.totalorder %s27, 0
      %p125 = por %p123, %p124
      %p126 = scmp.ne.s32.totalorder %s115, %s118
      %p127 = scmp.eq.s32.totalorder %s32, 1
      %p128 = por %p126, %p127
      %p129 = scmp.ne.s32.totalorder %s118, %s119
      %p130 = scmp.eq.s32.totalorder %s32, 0
      %p131 = por %p129, %p130
      %p132 = scmp.ne.s32.totalorder %s118, %s119
      %p133 = scmp.eq.s32.totalorder %s33, 1
      %p134 = por %p132, %p133
      %p136 = scmp.ne.s32.totalorder %s119, %s135
      %p137 = scmp.eq.s32.totalorder %s33, 0
      %p138 = por %p136, %p137
      %s139 = ssub.s32 %s27, %s34
      %p140 = scmp.eq.s32.totalorder %s139, 0
      %s142 = sadd.s32 %s141, 1
      %s143 = scalar_select %p140, %s141, %s142
      %p146 = pneg %p140
      %p147 = scmp.eq.s32.totalorder %s27, 1
      %p148 = por %p146, %p147
      %p149 = scmp.ne.s32.totalorder %s141, %s144
      %p150 = scmp.eq.s32.totalorder %s27, 0
      %p151 = por %p149, %p150
      %p152 = scmp.ne.s32.totalorder %s141, %s144
      %p153 = scmp.eq.s32.totalorder %s32, 1
      %p154 = por %p152, %p153
      %p155 = scmp.ne.s32.totalorder %s144, %s145
      %p156 = scmp.eq.s32.totalorder %s32, 0
      %p157 = por %p155, %p156
      %p158 = scmp.ne.s32.totalorder %s144, %s145
      %p159 = scmp.eq.s32.totalorder %s33, 1
      %p160 = por %p158, %p159
      %p162 = scmp.ne.s32.totalorder %s145, %s161
      %p163 = scmp.eq.s32.totalorder %s33, 0
      %p164 = por %p162, %p163
      %s165 = ssub.s32 %s27, %s34
      %p166 = scmp.eq.s32.totalorder %s165, 0
      %s168 = sadd.s32 %s167, 1
      %s169 = scalar_select %p166, %s167, %s168
      %p172 = pneg %p166
      %p173 = scmp.eq.s32.totalorder %s27, 1
      %p174 = por %p172, %p173
      %p175 = scmp.ne.s32.totalorder %s167, %s170
      %p176 = scmp.eq.s32.totalorder %s27, 0
      %p177 = por %p175, %p176
      %p178 = scmp.ne.s32.totalorder %s167, %s170
      %p179 = scmp.eq.s32.totalorder %s32, 1
      %p180 = por %p178, %p179
      %p181 = scmp.ne.s32.totalorder %s170, %s171
      %p182 = scmp.eq.s32.totalorder %s32, 0
      %p183 = por %p181, %p182
      %p184 = scmp.ne.s32.totalorder %s170, %s171
      %p185 = scmp.eq.s32.totalorder %s33, 1
      %p186 = por %p184, %p185
      %p188 = scmp.ne.s32.totalorder %s171, %s187
      %p189 = scmp.eq.s32.totalorder %s33, 0
      %p190 = por %p188, %p189
      %p191 = scmp.le.s32.totalorder 1, %s27
      %p192 = scmp.lt.s32.totalorder %s27, 3
      %p193 = pnand %p191, %p192
      %p194 = pneg %p193
      // Predicated region
      $region9: #{tpu_custom_call.1} parent=5 // pred_check
        _
      $region10: #{tpu_custom_call.1} parent=5 // pred_check_branch
        %196 = sbr.rel (%p193) target = $region12
      $region11: #{tpu_custom_call.1} parent=5 // pred_region
        %s197 = ssub.s32 %s27, 1
      $region12: #{tpu_custom_call.1} parent=5 // pred_fallthru
        _
      %p198 = scmp.lt.s32.totalorder %s27, 2
      // Predicated region
      $region13: #{tpu_custom_call.1} parent=5 // pred_check
        %p199 = pneg %p198
      $region14: #{tpu_custom_call.1} parent=5 // pred_check_branch
        %201 = sbr.rel (%p199) target = $region16
      $region15: #{tpu_custom_call.1} parent=5 // pred_region
        // Predicated region
        $region17: #{tpu_custom_call.1} parent=15 // pred_check
          %p202 = pneg %p47
        $region18: #{tpu_custom_call.1} parent=15 // pred_check_branch
          %204 = sbr.rel (%p202) target = $region20
        $region19: #{tpu_custom_call.1} parent=15 // pred_region
          %s205 = sand.u32 %s37, 1
          %s206 = scalar_lea.sflag [#allocation3], %s205
          %s207 = sand.u32 %s37, 1
          %s208 = smul.addr %s207, 16
          %s209 = scalar_lea.vmem [#allocation2], %s208
          %s210 = smul.u32 2, %s27
          %s212 = ssub.s32 256, 256
          %213 = vsyncadd %s206, %s212
          %s214 = smul.addr %s210, 128
          %s215 = scalar_lea.hbm %s0, %s214
          %s216 = sshll.u32 %s209, 4
          %s217 = int_to_ptr.vmem [resolvable:$true] %s216
          %222 = dma.hbm_to_vmem [thread:$0]  %s215, 256, %s217, %s206, 128, 128, 8
        $region20: #{tpu_custom_call.1} parent=15 // pred_fallthru
          _
        // Predicated region
        $region21: #{tpu_custom_call.1} parent=15 // pred_check
          %p223 = pneg %p73
        $region22: #{tpu_custom_call.1} parent=15 // pred_check_branch
          %225 = sbr.rel (%p223) target = $region24
        $region23: #{tpu_custom_call.1} parent=15 // pred_region
          %s226 = sand.u32 %s27, 1
          %s227 = scalar_lea.sflag [#allocation6], %s226
          %s228 = sand.u32 %s63, 1
          %s229 = smul.addr %s228, 16
          %s230 = scalar_lea.vmem [#allocation5], %s229
          %s231 = smul.u32 2, %s27
          %s233 = ssub.s32 256, 256
          %234 = vsyncadd %s227, %s233
          %s235 = smul.addr %s231, 128
          %s236 = scalar_lea.hbm %s1, %s235
          %s237 = sshll.u32 %s230, 4
          %s238 = int_to_ptr.vmem [resolvable:$true] %s237
          %243 = dma.hbm_to_vmem [thread:$0]  %s236, 256, %s238, %s227, 128, 128, 8
        $region24: #{tpu_custom_call.1} parent=15 // pred_fallthru
          _
        // Predicated region
        $region25: #{tpu_custom_call.1} parent=15 // pred_check
          %p244 = pneg %p99
        $region26: #{tpu_custom_call.1} parent=15 // pred_check_branch
          %246 = sbr.rel (%p244) target = $region28
        $region27: #{tpu_custom_call.1} parent=15 // pred_region
          %s247 = sand.u32 %s27, 1
          %s248 = scalar_lea.sflag [#allocation6], %s247
          %s249 = sand.u32 %s89, 1
          %s250 = smul.addr %s249, 16
          %s251 = scalar_lea.vmem [#allocation7], %s250
          %s252 = smul.u32 2, %s27
          %s254 = ssub.s32 256, 256
          %255 = vsyncadd %s248, %s254
          %s256 = smul.addr %s252, 128
          %s257 = scalar_lea.hbm %s2, %s256
          %s258 = sshll.u32 %s251, 4
          %s259 = int_to_ptr.vmem [resolvable:$true] %s258
          %264 = dma.hbm_to_vmem [thread:$0]  %s257, 256, %s259, %s248, 128, 128, 8
        $region28: #{tpu_custom_call.1} parent=15 // pred_fallthru
          _
        // Predicated region
        $region29: #{tpu_custom_call.1} parent=15 // pred_check
          %p265 = pneg %p125
        $region30: #{tpu_custom_call.1} parent=15 // pred_check_branch
          %267 = sbr.rel (%p265) target = $region32
        $region31: #{tpu_custom_call.1} parent=15 // pred_region
          %s268 = sand.u32 %s115, 1
          %s269 = scalar_lea.sflag [#allocation9], %s268
          %s270 = sand.u32 %s115, 1
          %s271 = smul.addr %s270, 16
          %s272 = scalar_lea.vmem [#allocation8], %s271
          %s273 = smul.u32 2, %s27
          %s275 = ssub.s32 256, 256
          %276 = vsyncadd %s269, %s275
          %s277 = smul.addr %s273, 128
          %s278 = scalar_lea.hbm %s3, %s277
          %s279 = sshll.u32 %s272, 4
          %s280 = int_to_ptr.vmem [resolvable:$true] %s279
          %285 = dma.hbm_to_vmem [thread:$0]  %s278, 256, %s280, %s269, 128, 128, 8
        $region32: #{tpu_custom_call.1} parent=15 // pred_fallthru
          _
      $region16: #{tpu_custom_call.1} parent=5 // pred_fallthru
        _
      %p286 = scmp.le.s32.totalorder 1, %s27
      %p287 = scmp.lt.s32.totalorder %s27, 3
      %p288 = pnand %p286, %p287
      %p289 = pneg %p288
      // Predicated region
      $region33: #{tpu_custom_call.1} parent=5 // pred_check
        _
      $region34: #{tpu_custom_call.1} parent=5 // pred_check_branch
        %291 = sbr.rel (%p288) target = $region36
      $region35: #{tpu_custom_call.1} parent=5 // pred_region
        %s292 = ssub.s32 %s27, 1
        %s293 = sand.u32 %s40, 1
        %s294 = scalar_lea.sflag [#allocation3], %s293
        %s295 = sand.u32 %s40, 1
        %s296 = smul.addr %s295, 16
        %s297 = scalar_lea.vmem [#allocation2], %s296
        // Predicated region
        $region37: #{tpu_custom_call.1} parent=35 // pred_check
          %p298 = pneg %p53
        $region38: #{tpu_custom_call.1} parent=35 // pred_check_branch
          %300 = sbr.rel (%p298) target = $region40
        $region39: #{tpu_custom_call.1} parent=35 // pred_region
          %301 = dma.done %s294, 256
        $region40: #{tpu_custom_call.1} parent=35 // pred_fallthru
          _
        %s302 = sand.u32 %s32, 1
        %s303 = scalar_lea.sflag [#allocation6], %s302
        %s304 = sand.u32 %s66, 1
        %s305 = smul.addr %s304, 16
        %s306 = scalar_lea.vmem [#allocation5], %s305
        // Predicated region
        $region41: #{tpu_custom_call.1} parent=35 // pred_check
          %p307 = pneg %p79
        $region42: #{tpu_custom_call.1} parent=35 // pred_check_branch
          %309 = sbr.rel (%p307) target = $region44
        $region43: #{tpu_custom_call.1} parent=35 // pred_region
          %310 = dma.done %s303, 256
        $region44: #{tpu_custom_call.1} parent=35 // pred_fallthru
          _
        %s311 = sand.u32 %s32, 1
        %s312 = scalar_lea.sflag [#allocation6], %s311
        %s313 = sand.u32 %s92, 1
        %s314 = smul.addr %s313, 16
        %s315 = scalar_lea.vmem [#allocation7], %s314
        // Predicated region
        $region45: #{tpu_custom_call.1} parent=35 // pred_check
          %p316 = pneg %p105
        $region46: #{tpu_custom_call.1} parent=35 // pred_check_branch
          %318 = sbr.rel (%p316) target = $region48
        $region47: #{tpu_custom_call.1} parent=35 // pred_region
          %319 = dma.done %s312, 256
        $region48: #{tpu_custom_call.1} parent=35 // pred_fallthru
          _
        %s320 = sand.u32 %s118, 1
        %s321 = scalar_lea.sflag [#allocation9], %s320
        %s322 = sand.u32 %s118, 1
        %s323 = smul.addr %s322, 16
        %s324 = scalar_lea.vmem [#allocation8], %s323
        // Predicated region
        $region49: #{tpu_custom_call.1} parent=35 // pred_check
          %p325 = pneg %p131
        $region50: #{tpu_custom_call.1} parent=35 // pred_check_branch
          %327 = sbr.rel (%p325) target = $region52
        $region51: #{tpu_custom_call.1} parent=35 // pred_region
          %328 = dma.done %s321, 256
        $region52: #{tpu_custom_call.1} parent=35 // pred_fallthru
          _
        %s329 = sand.u32 %s40, 1
        %s330 = scalar_lea.sflag [#allocation3], %s329
        %s331 = sand.u32 %s40, 1
        %s332 = smul.addr %s331, 16
        %s333 = scalar_lea.vmem [#allocation2], %s332
        %p334 = pneg %p53
        %p335 = pneg %p50
        %s336 = sand.u32 %s32, 1
        %s337 = scalar_lea.sflag [#allocation6], %s336
        %s338 = sand.u32 %s66, 1
        %s339 = smul.addr %s338, 16
        %s340 = scalar_lea.vmem [#allocation5], %s339
        %p341 = pneg %p79
        %p342 = pneg %p76
        %s343 = sand.u32 %s32, 1
        %s344 = scalar_lea.sflag [#allocation6], %s343
        %s345 = sand.u32 %s92, 1
        %s346 = smul.addr %s345, 16
        %s347 = scalar_lea.vmem [#allocation7], %s346
        %p348 = pneg %p105
        %p349 = pneg %p102
        %s350 = sand.u32 %s118, 1
        %s351 = scalar_lea.sflag [#allocation9], %s350
        %s352 = sand.u32 %s118, 1
        %s353 = smul.addr %s352, 16
        %s354 = scalar_lea.vmem [#allocation8], %s353
        %p355 = pneg %p131
        %p356 = pneg %p128
        %p357 = pneg %p157
        %p358 = pneg %p154
        %s359 = sand.u32 %s144, 1
        %s360 = scalar_lea.sflag [#allocation4], %s359
        %s361 = sand.u32 %s144, 1
        %s362 = smul.addr %s361, 16
        %s363 = scalar_lea.vmem [#allocation10], %s362
        %p364 = pneg %p183
        %p365 = pneg %p180
        %s366 = sand.u32 %s170, 1
        %s367 = scalar_lea.sflag [#allocation12], %s366
        %s368 = sand.u32 %s170, 1
        %s369 = smul.addr %s368, 16
        %s370 = scalar_lea.vmem [#allocation11], %s369
        %s371 = smul.u32 2, %s32
        %s372 = smul.u32 2, %s32
        %s373 = smul.u32 2, %s32
        %s374 = smul.u32 2, %s32
        %s375 = smul.u32 2, %s32
        %s376 = smul.u32 2, %s32
        %v377 = vld [vmem:[%s297] sm:$0xff]
        %v378 = vld [vmem:[%s297 + $0x8] sm:$0xff]
        %v379 = vld [vmem:[%s306] sm:$0xff]
        %v380 = vld [vmem:[%s306 + $0x8] sm:$0xff]
        %v381 = vld [vmem:[%s315] sm:$0xff]
        %v382 = vld [vmem:[%s315 + $0x8] sm:$0xff]
        %vm383 = vcmask 523264
        %v385 = vsel %vm383, %v377, 0
        %v388 = vsel %vm383, %v379, 0
        %390 = vmatprep.subr.mxu0 0.0
        %391 = vmatpush1.xpose.msra.mxu0 0.0
        %392 = vmatprep.subr.mxu0 0.0
        %393 = vmatpush1.xpose.msra.mxu0 0.0
        %394 = vmatprep.subr.mxu0 0.0
        %395 = vmatpush1.xpose.msra.mxu0 0.0
        %396 = vmatprep.subr.mxu0 0.0
        %397 = vmatpush1.xpose.msra.mxu0 0.0
        %398 = vmatprep.subr.mxu0 0.0
        %399 = vmatpush1.xpose.msra.mxu0 0.0
        %400 = vmatprep.subr.mxu0 0.0
        %401 = vmatpush1.xpose.msra.mxu0 0.0
        %402 = vmatprep.subr.mxu0 0.0
        %403 = vmatpush1.xpose.msra.mxu0 0.0
        %404 = vmatprep.subr.mxu0 0.0
        %405 = vmatpush1.xpose.msra.mxu0 0.0
        %406 = vmatprep.subr.mxu0 0.0
        %407 = vmatpush1.xpose.msra.mxu0 0.0
        %408 = vmatprep.subr.mxu0 0.0
        %409 = vmatpush1.xpose.msra.mxu0 0.0
        %410 = vmatprep.subr.mxu0 0.0
        %411 = vmatpush1.xpose.msra.mxu0 0.0
        %412 = vmatprep.subr.mxu0 0.0
        %413 = vmatpush1.xpose.msra.mxu0 0.0
        %414 = vmatprep.subr.mxu0 0.0
        %415 = vmatpush1.xpose.msra.mxu0 0.0
        %416 = vmatprep.subr.mxu0 0.0
        %417 = vmatpush1.xpose.msra.mxu0 0.0
        %418 = vmatprep.subr.mxu0 0.0
        %419 = vmatpush1.xpose.msra.mxu0 0.0
        %420 = vmatprep.subr.mxu0 0.0
        %421 = vmatpush1.xpose.msra.mxu0 %v388
        %422 = vmatprep.subr.mxu0 0.0
        %423 = vmatpush2.xpose.msra.mxu0 0.0
        %424 = vmatprep.subr.mxu0 0.0
        %425 = vmatpush2.xpose.msra.mxu0 0.0
        %426 = vmatprep.subr.mxu0 0.0
        %427 = vmatpush2.xpose.msra.mxu0 0.0
        %428 = vmatprep.subr.mxu0 0.0
        %429 = vmatpush2.xpose.msra.mxu0 0.0
        %430 = vmatprep.subr.mxu0 0.0
        %431 = vmatpush2.xpose.msra.mxu0 0.0
        %432 = vmatprep.subr.mxu0 0.0
        %433 = vmatpush2.xpose.msra.mxu0 0.0
        %434 = vmatprep.subr.mxu0 0.0
        %435 = vmatpush2.xpose.msra.mxu0 0.0
        %436 = vmatprep.subr.mxu0 0.0
        %437 = vmatpush2.xpose.msra.mxu0 0.0
        %438 = vmatprep.subr.mxu0 0.0
        %439 = vmatpush2.xpose.msra.mxu0 0.0
        %440 = vmatprep.subr.mxu0 0.0
        %441 = vmatpush2.xpose.msra.mxu0 0.0
        %442 = vmatprep.subr.mxu0 0.0
        %443 = vmatpush2.xpose.msra.mxu0 0.0
        %444 = vmatprep.subr.mxu0 0.0
        %445 = vmatpush2.xpose.msra.mxu0 0.0
        %446 = vmatprep.subr.mxu0 0.0
        %447 = vmatpush2.xpose.msra.mxu0 0.0
        %448 = vmatprep.subr.mxu0 0.0
        %449 = vmatpush2.xpose.msra.mxu0 0.0
        %450 = vmatprep.subr.mxu0 0.0
        %451 = vmatpush2.xpose.msra.mxu0 0.0
        %452 = vmatprep.subr.mxu0 0.0
        %453 = vmatpush2.xpose.msra.mxu0 0.0
        %454 = vmatprep.mubr.f32.mxu0 0.0
        %455 = vmatmul.mubr.f32.gmra.mxu0 %v385
        %v456 = vpop.f32.mrf.mxu0
        %v457 = vadd.f32 0.0, %v456
        %v458 = vpop.f32.mrf.mxu0
        %459 = vdwg.mxu0
        %v461 = vsel %vm383, %v378, 0
        %v464 = vsel %vm383, %v380, 0
        %466 = vmatprep.subr.mxu0 0.0
        %467 = vmatpush1.xpose.msra.mxu0 0.0
        %468 = vmatprep.subr.mxu0 0.0
        %469 = vmatpush1.xpose.msra.mxu0 0.0
        %470 = vmatprep.subr.mxu0 0.0
        %471 = vmatpush1.xpose.msra.mxu0 0.0
        %472 = vmatprep.subr.mxu0 0.0
        %473 = vmatpush1.xpose.msra.mxu0 0.0
        %474 = vmatprep.subr.mxu0 0.0
        %475 = vmatpush1.xpose.msra.mxu0 0.0
        %476 = vmatprep.subr.mxu0 0.0
        %477 = vmatpush1.xpose.msra.mxu0 0.0
        %478 = vmatprep.subr.mxu0 0.0
        %479 = vmatpush1.xpose.msra.mxu0 0.0
        %480 = vmatprep.subr.mxu0 0.0
        %481 = vmatpush1.xpose.msra.mxu0 0.0
        %482 = vmatprep.subr.mxu0 0.0
        %483 = vmatpush1.xpose.msra.mxu0 0.0
        %484 = vmatprep.subr.mxu0 0.0
        %485 = vmatpush1.xpose.msra.mxu0 0.0
        %486 = vmatprep.subr.mxu0 0.0
        %487 = vmatpush1.xpose.msra.mxu0 0.0
        %488 = vmatprep.subr.mxu0 0.0
        %489 = vmatpush1.xpose.msra.mxu0 0.0
        %490 = vmatprep.subr.mxu0 0.0
        %491 = vmatpush1.xpose.msra.mxu0 0.0
        %492 = vmatprep.subr.mxu0 0.0
        %493 = vmatpush1.xpose.msra.mxu0 0.0
        %494 = vmatprep.subr.mxu0 0.0
        %495 = vmatpush1.xpose.msra.mxu0 0.0
        %496 = vmatprep.subr.mxu0 0.0
        %497 = vmatpush1.xpose.msra.mxu0 %v464
        %498 = vmatprep.subr.mxu0 0.0
        %499 = vmatpush2.xpose.msra.mxu0 0.0
        %500 = vmatprep.subr.mxu0 0.0
        %501 = vmatpush2.xpose.msra.mxu0 0.0
        %502 = vmatprep.subr.mxu0 0.0
        %503 = vmatpush2.xpose.msra.mxu0 0.0
        %504 = vmatprep.subr.mxu0 0.0
        %505 = vmatpush2.xpose.msra.mxu0 0.0
        %506 = vmatprep.subr.mxu0 0.0
        %507 = vmatpush2.xpose.msra.mxu0 0.0
        %508 = vmatprep.subr.mxu0 0.0
        %509 = vmatpush2.xpose.msra.mxu0 0.0
        %510 = vmatprep.subr.mxu0 0.0
        %511 = vmatpush2.xpose.msra.mxu0 0.0
        %512 = vmatprep.subr.mxu0 0.0
        %513 = vmatpush2.xpose.msra.mxu0 0.0
        %514 = vmatprep.subr.mxu0 0.0
        %515 = vmatpush2.xpose.msra.mxu0 0.0
        %516 = vmatprep.subr.mxu0 0.0
        %517 = vmatpush2.xpose.msra.mxu0 0.0
        %518 = vmatprep.subr.mxu0 0.0
        %519 = vmatpush2.xpose.msra.mxu0 0.0
        %520 = vmatprep.subr.mxu0 0.0
        %521 = vmatpush2.xpose.msra.mxu0 0.0
        %522 = vmatprep.subr.mxu0 0.0
        %523 = vmatpush2.xpose.msra.mxu0 0.0
        %524 = vmatprep.subr.mxu0 0.0
        %525 = vmatpush2.xpose.msra.mxu0 0.0
        %526 = vmatprep.subr.mxu0 0.0
        %527 = vmatpush2.xpose.msra.mxu0 0.0
        %528 = vmatprep.subr.mxu0 0.0
        %529 = vmatpush2.xpose.msra.mxu0 0.0
        %530 = vmatprep.mubr.f32.mxu0 0.0
        %531 = vmatmul.mubr.f32.gmra.mxu0 %v461
        %v532 = vpop.f32.mrf.mxu0
        %v533 = vadd.f32 0.0, %v532
        %v534 = vpop.f32.mrf.mxu0
        %535 = vdwg.mxu0
        %v536 = vmul.f32 %v457, 0.125
        %v537 = vmul.f32 %v533, 0.125
        %v538 = vld [vmem:[%s324] sm:$0xff]
        %v539 = vld [vmem:[%s324 + $0x8] sm:$0xff]
        %vm540 = vcmp.ne.s32.totalorder %v538, 0
        %vm541 = vcmp.ne.s32.totalorder %v539, 0
        %v542 = vsel %vm540, -1e+09, %v536
        %v543 = vsel %vm541, -1e+09, %v537
        %vm544 = vcmask 64512
        %v545 = vsel %vm544, %v542, -inf
        %546 = vmax.xlane.f32.xlu0 %v545
        %v547 = vpop.xlane.xlu0 %546
        %v548 = vsel %vm544, %v543, -inf
        %549 = vmax.xlane.f32.xlu0 %v548
        %v550 = vpop.xlane.xlu0 %549
        %v551 = vsub.f32 %v542, %v547
        %v552 = vsub.f32 %v543, %v550
        %v553 = vmul.f32 %v551, 1.442695
        %v554 = vpow.pop %v553
        %v555 = vmul.f32 %v552, 1.442695
        %v556 = vpow.pop %v555
        %v557 = vsel %vm544, %v554, 0.0
        %558 = vadd.xlane.f32.xlu0 %v557
        %v559 = vpop.xlane.xlu0 %558
        %v560 = vsel %vm544, %v556, 0.0
        %561 = vadd.xlane.f32.xlu0 %v560
        %v562 = vpop.xlane.xlu0 %561
        %v563 = vrcp.pop %v559
        %v564 = vrcp.pop %v562
        %v565 = vmul.f32 %v554, %v563
        %v566 = vmul.f32 %v556, %v564
        %v568 = vsel %vm544, %v565, 0
        %570 = vmatprep.subr.mxu0 0.0
        %571 = vmatpush1.msra.mxu0 0.0
        %572 = vmatprep.subr.mxu0 0.0
        %573 = vmatpush1.msra.mxu0 0.0
        %574 = vmatprep.subr.mxu0 0.0
        %575 = vmatpush1.msra.mxu0 0.0
        %576 = vmatprep.subr.mxu0 0.0
        %577 = vmatpush1.msra.mxu0 0.0
        %578 = vmatprep.subr.mxu0 0.0
        %579 = vmatpush1.msra.mxu0 0.0
        %580 = vmatprep.subr.mxu0 0.0
        %581 = vmatpush1.msra.mxu0 0.0
        %582 = vmatprep.subr.mxu0 0.0
        %583 = vmatpush1.msra.mxu0 0.0
        %584 = vmatprep.subr.mxu0 0.0
        %585 = vmatpush1.msra.mxu0 0.0
        %586 = vmatprep.subr.mxu0 0.0
        %587 = vmatpush1.msra.mxu0 0.0
        %588 = vmatprep.subr.mxu0 0.0
        %589 = vmatpush1.msra.mxu0 0.0
        %590 = vmatprep.subr.mxu0 0.0
        %591 = vmatpush1.msra.mxu0 0.0
        %592 = vmatprep.subr.mxu0 0.0
        %593 = vmatpush1.msra.mxu0 0.0
        %594 = vmatprep.subr.mxu0 0.0
        %595 = vmatpush1.msra.mxu0 0.0
        %596 = vmatprep.subr.mxu0 0.0
        %597 = vmatpush1.msra.mxu0 0.0
        %598 = vmatprep.subr.mxu0 0.0
        %599 = vmatpush1.msra.mxu0 0.0
        %600 = vmatprep.subr.mxu0 0.0
        %601 = vmatpush1.msra.mxu0 %v381
        %602 = vmatprep.subr.mxu0 0.0
        %603 = vmatpush2.msra.mxu0 0.0
        %604 = vmatprep.subr.mxu0 0.0
        %605 = vmatpush2.msra.mxu0 0.0
        %606 = vmatprep.subr.mxu0 0.0
        %607 = vmatpush2.msra.mxu0 0.0
        %608 = vmatprep.subr.mxu0 0.0
        %609 = vmatpush2.msra.mxu0 0.0
        %610 = vmatprep.subr.mxu0 0.0
        %611 = vmatpush2.msra.mxu0 0.0
        %612 = vmatprep.subr.mxu0 0.0
        %613 = vmatpush2.msra.mxu0 0.0
        %614 = vmatprep.subr.mxu0 0.0
        %615 = vmatpush2.msra.mxu0 0.0
        %616 = vmatprep.subr.mxu0 0.0
        %617 = vmatpush2.msra.mxu0 0.0
        %618 = vmatprep.subr.mxu0 0.0
        %619 = vmatpush2.msra.mxu0 0.0
        %620 = vmatprep.subr.mxu0 0.0
        %621 = vmatpush2.msra.mxu0 0.0
        %622 = vmatprep.subr.mxu0 0.0
        %623 = vmatpush2.msra.mxu0 0.0
        %624 = vmatprep.subr.mxu0 0.0
        %625 = vmatpush2.msra.mxu0 0.0
        %626 = vmatprep.subr.mxu0 0.0
        %627 = vmatpush2.msra.mxu0 0.0
        %628 = vmatprep.subr.mxu0 0.0
        %629 = vmatpush2.msra.mxu0 0.0
        %630 = vmatprep.subr.mxu0 0.0
        %631 = vmatpush2.msra.mxu0 0.0
        %632 = vmatprep.subr.mxu0 0.0
        %633 = vmatpush2.msra.mxu0 0.0
        %634 = vmatprep.mubr.f32.mxu0 0.0
        %635 = vmatmul.mubr.f32.gmra.mxu0 %v568
        %v636 = vpop.f32.mrf.mxu0
        %v637 = vadd.f32 0.0, %v636
        %v638 = vpop.f32.mrf.mxu0
        %639 = vdwg.mxu0
        %v641 = vsel %vm544, %v566, 0
        %643 = vmatprep.subr.mxu0 0.0
        %644 = vmatpush1.msra.mxu0 0.0
        %645 = vmatprep.subr.mxu0 0.0
        %646 = vmatpush1.msra.mxu0 0.0
        %647 = vmatprep.subr.mxu0 0.0
        %648 = vmatpush1.msra.mxu0 0.0
        %649 = vmatprep.subr.mxu0 0.0
        %650 = vmatpush1.msra.mxu0 0.0
        %651 = vmatprep.subr.mxu0 0.0
        %652 = vmatpush1.msra.mxu0 0.0
        %653 = vmatprep.subr.mxu0 0.0
        %654 = vmatpush1.msra.mxu0 0.0
        %655 = vmatprep.subr.mxu0 0.0
        %656 = vmatpush1.msra.mxu0 0.0
        %657 = vmatprep.subr.mxu0 0.0
        %658 = vmatpush1.msra.mxu0 0.0
        %659 = vmatprep.subr.mxu0 0.0
        %660 = vmatpush1.msra.mxu0 0.0
        %661 = vmatprep.subr.mxu0 0.0
        %662 = vmatpush1.msra.mxu0 0.0
        %663 = vmatprep.subr.mxu0 0.0
        %664 = vmatpush1.msra.mxu0 0.0
        %665 = vmatprep.subr.mxu0 0.0
        %666 = vmatpush1.msra.mxu0 0.0
        %667 = vmatprep.subr.mxu0 0.0
        %668 = vmatpush1.msra.mxu0 0.0
        %669 = vmatprep.subr.mxu0 0.0
        %670 = vmatpush1.msra.mxu0 0.0
        %671 = vmatprep.subr.mxu0 0.0
        %672 = vmatpush1.msra.mxu0 0.0
        %673 = vmatprep.subr.mxu0 0.0
        %674 = vmatpush1.msra.mxu0 %v382
        %675 = vmatprep.subr.mxu0 0.0
        %676 = vmatpush2.msra.mxu0 0.0
        %677 = vmatprep.subr.mxu0 0.0
        %678 = vmatpush2.msra.mxu0 0.0
        %679 = vmatprep.subr.mxu0 0.0
        %680 = vmatpush2.msra.mxu0 0.0
        %681 = vmatprep.subr.mxu0 0.0
        %682 = vmatpush2.msra.mxu0 0.0
        %683 = vmatprep.subr.mxu0 0.0
        %684 = vmatpush2.msra.mxu0 0.0
        %685 = vmatprep.subr.mxu0 0.0
        %686 = vmatpush2.msra.mxu0 0.0
        %687 = vmatprep.subr.mxu0 0.0
        %688 = vmatpush2.msra.mxu0 0.0
        %689 = vmatprep.subr.mxu0 0.0
        %690 = vmatpush2.msra.mxu0 0.0
        %691 = vmatprep.subr.mxu0 0.0
        %692 = vmatpush2.msra.mxu0 0.0
        %693 = vmatprep.subr.mxu0 0.0
        %694 = vmatpush2.msra.mxu0 0.0
        %695 = vmatprep.subr.mxu0 0.0
        %696 = vmatpush2.msra.mxu0 0.0
        %697 = vmatprep.subr.mxu0 0.0
        %698 = vmatpush2.msra.mxu0 0.0
        %699 = vmatprep.subr.mxu0 0.0
        %700 = vmatpush2.msra.mxu0 0.0
        %701 = vmatprep.subr.mxu0 0.0
        %702 = vmatpush2.msra.mxu0 0.0
        %703 = vmatprep.subr.mxu0 0.0
        %704 = vmatpush2.msra.mxu0 0.0
        %705 = vmatprep.subr.mxu0 0.0
        %706 = vmatpush2.msra.mxu0 0.0
        %707 = vmatprep.mubr.f32.mxu0 0.0
        %708 = vmatmul.mubr.f32.gmra.mxu0 %v641
        %v709 = vpop.f32.mrf.mxu0
        %v710 = vadd.f32 0.0, %v709
        %v711 = vpop.f32.mrf.mxu0
        %712 = vdwg.mxu0
        %713 = vst.msk [vmem:[%s363] sm:$0xff] %vm383, %v637
        %714 = vst.msk [vmem:[%s363 + $0x8] sm:$0xff] %vm383, %v710
        %715 = vst.msk [vmem:[%s370] sm:$0xff] %vm544, %v565
        %716 = vst.msk [vmem:[%s370 + $0x8] sm:$0xff] %vm544, %v566
        %s717 = sand.u32 %s144, 1
        %s718 = scalar_lea.sflag [#allocation4], %s717
        %s719 = sand.u32 %s144, 1
        %s720 = smul.addr %s719, 16
        %s721 = scalar_lea.vmem [#allocation10], %s720
        %s722 = sand.u32 %s170, 1
        %s723 = scalar_lea.sflag [#allocation12], %s722
        %s724 = sand.u32 %s170, 1
        %s725 = smul.addr %s724, 16
        %s726 = scalar_lea.vmem [#allocation11], %s725
        // Predicated region
        $region53: #{tpu_custom_call.1} parent=35 // pred_check
          %p727 = pneg %p154
        $region54: #{tpu_custom_call.1} parent=35 // pred_check_branch
          %729 = sbr.rel (%p727) target = $region56
        $region55: #{tpu_custom_call.1} parent=35 // pred_region
          %s730 = smul.u32 2, %s32
          %s732 = ssub.s32 256, 256
          %733 = vsyncadd %s718, %s732
          %s734 = smul.addr %s730, 128
          %s735 = scalar_lea.hbm %s4, %s734
          %s736 = sshll.u32 %s721, 4
          %s737 = int_to_ptr.vmem [resolvable:$true] %s736
          %742 = dma.vmem_to_hbm [thread:$0]  %s737, 256, %s735, %s718, 128, 128, 8
        $region56: #{tpu_custom_call.1} parent=35 // pred_fallthru
          _
        // Predicated region
        $region57: #{tpu_custom_call.1} parent=35 // pred_check
          %p743 = pneg %p180
        $region58: #{tpu_custom_call.1} parent=35 // pred_check_branch
          %745 = sbr.rel (%p743) target = $region60
        $region59: #{tpu_custom_call.1} parent=35 // pred_region
          %s746 = smul.u32 2, %s32
          %s748 = ssub.s32 256, 256
          %749 = vsyncadd %s723, %s748
          %s750 = smul.addr %s746, 128
          %s751 = scalar_lea.hbm %s5, %s750
          %s752 = sshll.u32 %s726, 4
          %s753 = int_to_ptr.vmem [resolvable:$true] %s752
          %758 = dma.vmem_to_hbm [thread:$0]  %s753, 256, %s751, %s723, 128, 128, 8
        $region60: #{tpu_custom_call.1} parent=35 // pred_fallthru
          _
      $region36: #{tpu_custom_call.1} parent=5 // pred_fallthru
        _
      %p759 = scmp.le.s32.totalorder 2, %s27
      // Predicated region
      $region61: #{tpu_custom_call.1} parent=5 // pred_check
        %p760 = pneg %p759
      $region62: #{tpu_custom_call.1} parent=5 // pred_check_branch
        %762 = sbr.rel (%p760) target = $region64
      $region63: #{tpu_custom_call.1} parent=5 // pred_region
        %s763 = ssub.s32 %s27, 2
        // Predicated region
        $region65: #{tpu_custom_call.1} parent=63 // pred_check
          %p764 = pneg %p160
        $region66: #{tpu_custom_call.1} parent=63 // pred_check_branch
          %766 = sbr.rel (%p764) target = $region68
        $region67: #{tpu_custom_call.1} parent=63 // pred_region
          %s767 = sand.u32 %s145, 1
          %s768 = scalar_lea.sflag [#allocation4], %s767
          %s769 = sand.u32 %s145, 1
          %s770 = smul.addr %s769, 16
          %s771 = scalar_lea.vmem [#allocation10], %s770
          %772 = dma.done %s768, 256
        $region68: #{tpu_custom_call.1} parent=63 // pred_fallthru
          _
        // Predicated region
        $region69: #{tpu_custom_call.1} parent=63 // pred_check
          %p773 = pneg %p186
        $region70: #{tpu_custom_call.1} parent=63 // pred_check_branch
          %775 = sbr.rel (%p773) target = $region72
        $region71: #{tpu_custom_call.1} parent=63 // pred_region
          %s776 = sand.u32 %s171, 1
          %s777 = scalar_lea.sflag [#allocation12], %s776
          %s778 = sand.u32 %s171, 1
          %s779 = smul.addr %s778, 16
          %s780 = scalar_lea.vmem [#allocation11], %s779
          %781 = dma.done %s777, 256
        $region72: #{tpu_custom_call.1} parent=63 // pred_fallthru
          _
      $region64: #{tpu_custom_call.1} parent=5 // pred_fallthru
        _
    $region6: #{tpu_custom_call.1} parent=1 // loop_footer
      %s31 = sadd.s32 1, %s27
    $region7: #{tpu_custom_call.1} parent=1 // loop_footer_branch
      %26 = sbr.rel target = $region3
    $region8: #{tpu_custom_call.1} parent=1 // loop_exit
      _
    %782 = vsyncpa [#allocation3], 1
    %s783 = scalar_lea.sflag [#allocation3], 1
    %784 = vsyncpa %s783, 1
    %785 = vsyncpa [#allocation6], 1
    %s786 = scalar_lea.sflag [#allocation6], 1
    %787 = vsyncpa %s786, 1
    %788 = vsyncpa [#allocation9], 1
    %s789 = scalar_lea.sflag [#allocation9], 1
    %790 = vsyncpa %s789, 1
    %791 = vsyncpa [#allocation4], 1
    %s792 = scalar_lea.sflag [#allocation4], 1
    %793 = vsyncpa %s792, 1
    %794 = vsyncpa [#allocation12], 1
    %s795 = scalar_lea.sflag [#allocation12], 1
    %796 = vsyncpa %s795, 1

</llo_original>
